<compile_context>
chip_gen: v5e
topology: v5e:2x2
jax: 0.10.0
libtpu: 0.0.40
codegen_flags: <defaults>
</compile_context>

<pallas_src>
import numpy as np

import jax
import jax.numpy as jnp
from jax.experimental import pallas as pl
from jax.experimental.pallas import tpu as pltpu


def _direct_kernel(x_ref, min_ref, scale_ref, o_ref):
    """Elementwise affine on a lane-dense (tm, 128) tile.

    Even lanes carry lon, odd lanes carry lat; min_ref / scale_ref are (1,128)
    per-lane constants, so the tile is one fused sub/mul/sub on the VPU.
    """
    x = x_ref[...].astype(jnp.float32)
    o_ref[...] = (x - min_ref[...]) * scale_ref[...] - 1.0


def _direct_jnp(coords, lon_min, lon_max, lat_min, lat_max):
    lon = 2.0 * (coords[:, 0] - lon_min) / (lon_max - lon_min) - 1.0
    lat = 2.0 * (coords[:, 1] - lat_min) / (lat_max - lat_min) - 1.0
    return jnp.stack([lon, lat], axis=1).astype(jnp.float32)


def _round_up(a, b):
    return -(-a // b) * b


def direct_forward(coords, lon_min, lon_max, lat_min, lat_max,
                   *, max_block_rows=2048, min_pallas_coords=1024):
    """coords: [N, 2] array (any float dtype).  Returns [N, 2] float32."""
    n, c = coords.shape
    assert c == 2, "coords must be [N, 2]"

    # Tiny inputs: fixed pallas_call dispatch dwarfs one mul-add per element.
    # TODO(synk): fuse into the consumer kernel instead of a standalone call.
    if n < min_pallas_coords:
        return _direct_jnp(coords, lon_min, lon_max, lat_min, lat_max)

    total = n * 2
    flat = coords.reshape(total)          # free: coords is row-major contiguous

    # Lane-dense view: rows of 128 lanes, even lanes = lon, odd lanes = lat.
    # Pad only when strictly needed (2N not a multiple of 128, i.e. N % 64 != 0).
    pad = (-total) % 128
    if pad:
        # TODO(synk): a masked-tail variant (bulk+tail split) would avoid this
        # extra HBM round trip for ragged N; ragged N is the uncommon case.
        flat = jnp.pad(flat, (0, pad))
    rows = (total + pad) // 128
    x = flat.reshape(rows, 128)           # free when pad == 0

    # Dtype-aware sublane multiple for the block's second-minor dim:
    # 8 for 32-bit, 16 for 16-bit, 32 for 8-bit packed inputs.
    itemsize = jnp.dtype(coords.dtype).itemsize
    sub_mult = max(8, 32 // max(itemsize, 1))

    if rows <= sub_mult:
        tm = rows                          # one block == full array dims (legal)
    else:
        # >=2 blocks so both v7x TensorCores get work; cap at ~1 MiB f32 per
        # block so in+out double-buffering stays well under v5e's 16 MiB
        # scoped-VMEM default (and far under v6e/v7x limits).
        tm = min(max_block_rows, _round_up(pl.cdiv(rows, 2), sub_mult))
    grid = (pl.cdiv(rows, tm),)            # last block may be partial

    # Per-lane affine constants: lon params on even lanes, lat on odd lanes.
    lane_is_lon = (np.arange(128) % 2) == 0
    lane_min = np.where(lane_is_lon, float(lon_min), float(lat_min))
    lane_scale = np.where(lane_is_lon,
                          2.0 / (float(lon_max) - float(lon_min)),
                          2.0 / (float(lat_max) - float(lat_min)))
    lane_min = jnp.asarray(lane_min.reshape(1, 128), dtype=jnp.float32)
    lane_scale = jnp.asarray(lane_scale.reshape(1, 128), dtype=jnp.float32)

    out = pl.pallas_call(
        _direct_kernel,
        out_shape=jax.ShapeDtypeStruct((rows, 128), jnp.float32),
        grid=grid,
        in_specs=[
            pl.BlockSpec((tm, 128), lambda i: (i, 0)),
            pl.BlockSpec((1, 128), lambda i: (0, 0)),
            pl.BlockSpec((1, 128), lambda i: (0, 0)),
        ],
        out_specs=pl.BlockSpec((tm, 128), lambda i: (i, 0)),
        compiler_params=pltpu.CompilerParams(
            dimension_semantics=("parallel",)),
    )(x, lane_min, lane_scale)

    flat_out = out.reshape(rows * 128)     # free
    if pad:
        flat_out = flat_out[:total]        # copy only on the ragged path
    return flat_out.reshape(n, 2)          # free


if __name__ == "__main__":
    # Module "parameters" (constructor args) — deterministic, no checkpoint.
    lon_min, lon_max = -180.0, 180.0
    lat_min, lat_max = -90.0, 90.0

    key = jax.random.PRNGKey(0)
    k1, k2 = jax.random.split(key)
    n_all = 4100
    lon = jax.random.uniform(k1, (n_all,), minval=lon_min, maxval=lon_max)
    lat = jax.random.uniform(k2, (n_all,), minval=lat_min, maxval=lat_max)
    coords_all = jnp.stack([lon, lat], axis=1)            # [n_all, 2] float32

    # 1) Main Pallas path: N % 64 == 0 -> zero wrapper copies, 2-block grid.
    n = 4096
    coords = coords_all[:n]
    out = direct_forward(coords, lon_min, lon_max, lat_min, lat_max)
    out = jax.block_until_ready(out)
    ref = _direct_jnp(coords, lon_min, lon_max, lat_min, lat_max)
    assert out.shape == (n, 2) and out.dtype == jnp.float32
    assert jnp.allclose(out, ref, atol=1e-5, rtol=1e-5), "aligned path mismatch"

    # 2) Ragged Pallas path: N % 64 != 0 -> minimal pad + partial last block.
    out2 = direct_forward(coords_all, lon_min, lon_max, lat_min, lat_max)
    out2 = jax.block_until_ready(out2)
    ref2 = _direct_jnp(coords_all, lon_min, lon_max, lat_min, lat_max)
    assert out2.shape == (n_all, 2) and out2.dtype == jnp.float32
    assert jnp.allclose(out2, ref2, atol=1e-5, rtol=1e-5), "ragged path mismatch"

    # 3) Small-N fallback (skips the standalone pallas_call by design).
    coords_small = coords_all[:256]
    out3 = direct_forward(coords_small, lon_min, lon_max, lat_min, lat_max)
    out3 = jax.block_until_ready(out3)
    ref3 = _direct_jnp(coords_small, lon_min, lon_max, lat_min, lat_max)
    assert jnp.allclose(out3, ref3, atol=1e-5, rtol=1e-5), "small-N mismatch"

    print("KERNEL_OK")
</pallas_src>

<mosaic_0001>
module attributes {stable_mosaic.version = 11 : i64} {
  func.func @_direct_kernel(%arg0: i32, %arg1: memref<32x128xf32, #tpu.memory_space<vmem>>, %arg2: memref<1x128xf32, #tpu.memory_space<vmem>>, %arg3: memref<1x128xf32, #tpu.memory_space<vmem>>, %arg4: memref<32x128xf32, #tpu.memory_space<vmem>>) attributes {dimension_semantics = [#tpu.dimension_semantics<parallel>], iteration_bounds = array<i64: 2>, scalar_prefetch = 0 : i64, scratch_operands = 0 : i64, tpu.core_type = #tpu.core_type<tc>, window_params = [{transform_indices = @transform_0, window_bounds = array<i64: 32, 128>}, {pipeline_mode = #tpu.pipeline_mode<synchronous>, transform_indices = @transform_1, window_bounds = array<i64: 1, 128>}, {pipeline_mode = #tpu.pipeline_mode<synchronous>, transform_indices = @transform_2, window_bounds = array<i64: 1, 128>}, {transform_indices = @transform_3, window_bounds = array<i64: 32, 128>}]} {
    %c0 = arith.constant 0 : index
    %c0_0 = arith.constant 0 : index
    %0 = vector.load %arg1[%c0, %c0_0] : memref<32x128xf32, #tpu.memory_space<vmem>>, vector<32x128xf32>
    %c0_1 = arith.constant 0 : index
    %c0_2 = arith.constant 0 : index
    %1 = vector.load %arg2[%c0_1, %c0_2] : memref<1x128xf32, #tpu.memory_space<vmem>>, vector<1x128xf32>
    %2 = vector.broadcast %1 : vector<1x128xf32> to vector<32x128xf32>
    %3 = arith.subf %0, %2 : vector<32x128xf32>
    %c0_3 = arith.constant 0 : index
    %c0_4 = arith.constant 0 : index
    %4 = vector.load %arg3[%c0_3, %c0_4] : memref<1x128xf32, #tpu.memory_space<vmem>>, vector<1x128xf32>
    %5 = vector.broadcast %4 : vector<1x128xf32> to vector<32x128xf32>
    %6 = arith.mulf %3, %5 : vector<32x128xf32>
    %cst = arith.constant 1.000000e+00 : f32
    %7 = vector.broadcast %cst : f32 to vector<32x128xf32>
    %8 = arith.subf %6, %7 : vector<32x128xf32>
    %c0_5 = arith.constant 0 : index
    %c0_6 = arith.constant 0 : index
    %9 = vector.load %arg4[%c0_5, %c0_6] : memref<32x128xf32, #tpu.memory_space<vmem>>, vector<32x128xf32>
    tpu.vector_store %arg4[%c0_5, %c0_6], %8 {strides = array<i32>} : memref<32x128xf32, #tpu.memory_space<vmem>>, vector<32x128xf32>,
    return
  }
  func.func @transform_0(%arg0: i32) -> (i32, i32) {
    %c0_i32 = arith.constant 0 : i32
    %c0_i32_0 = arith.constant 0 : i32
    return %arg0, %c0_i32 : i32, i32
  }
  func.func @transform_1(%arg0: i32) -> (i32, i32) {
    %c0_i32 = arith.constant 0 : i32
    %c0_i32_0 = arith.constant 0 : i32
    %c0_i32_1 = arith.constant 0 : i32
    return %c0_i32, %c0_i32_0 : i32, i32
  }
  func.func @transform_2(%arg0: i32) -> (i32, i32) {
    %c0_i32 = arith.constant 0 : i32
    %c0_i32_0 = arith.constant 0 : i32
    %c0_i32_1 = arith.constant 0 : i32
    return %c0_i32, %c0_i32_0 : i32, i32
  }
  func.func @transform_3(%arg0: i32) -> (i32, i32) {
    %c0_i32 = arith.constant 0 : i32
    %c0_i32_0 = arith.constant 0 : i32
    return %arg0, %c0_i32 : i32, i32
  }
}

</mosaic_0001>

<llo_original>
// kernel: tpu_custom_call.1
$region0: #{tpu_custom_call.1}
  #allocation0 [shape = 'u32[]', space=smem, size = 0x4, offset = 0x4, fixed_abs, tag = 'smem constant byte address 0x4 - core index']
  #allocation1 [shape = 'u32[72,128]{1,0:T(1,128)}', space=vmem, size = 0x9000, scoped, tag = 'internal scratch']
  %s0 = inlined_call_operand.hbm [shape: f32[64,128], index: 0, kind: input, shape index: {}]
  %s1 = inlined_call_operand.hbm [shape: f32[1,128], index: 1, kind: input, shape index: {}]
  %s2 = inlined_call_operand.vmem [shape: f32[1,128], index: 2, kind: input, shape index: {}]
  %s3 = inlined_call_operand.hbm [shape: f32[64,128], index: 3, kind: output, shape index: {}]
  %s4 = sld [smem:[#allocation0]]
  $region53: #{tpu_custom_call.1} parent=0
    _
  %s6 = ssub.s32 1, %s4
  %s7 = scalar_select 0, %s6, %s4
  $region1: #{tpu_custom_call.1} parent=0
    #allocation2 [shape = 'u8[32768]{0}', space=vmem, size = 0x8000, scoped, tag = 'input window, operand 0']
    #allocation3 [shape = 's32[2]{0}', space=sflag, size = 0x8, scoped, tag = 'scoped memory for tpu_custom_call.1']
    #allocation4 [shape = 's32[2]{0}', space=sflag, size = 0x8, scoped, tag = 'scoped memory for tpu_custom_call.1']
    #allocation5 [shape = 'u8[512]{0}', space=vmem, size = 0x400, scoped, tag = 'input window, operand 1, single buffered']
    #allocation6 [shape = 's32[1]{0}', space=sflag, size = 0x4, scoped, tag = 'scoped memory for tpu_custom_call.1']
    #allocation7 [shape = 'u8[32768]{0}', space=vmem, size = 0x8000, scoped, tag = 'output window, operand 0']
    %8 = vsyncpa [#allocation3], 0
    %s9 = scalar_lea.sflag [#allocation3], 1
    %10 = vsyncpa %s9, 0
    %11 = vsyncpa [#allocation6], 0
    %12 = vsyncpa [#allocation4], 0
    %s13 = scalar_lea.sflag [#allocation4], 1
    %14 = vsyncpa %s13, 0
    loop: start=0, step=1, limit=4
    $region2: #{tpu_custom_call.1} parent=1 // loop_pre_header
      _
    $region3: #{tpu_custom_call.1} parent=1 // loop_header
      %s16 = sphi 0, %s20
      %p17 = scmp.ge.s32.totalorder %s16, 4
      %s26 = sphi 0, %s28
      %s29 = sphi 0, %s26
      %s30 = sphi 0, %s29
      %s46 = sphi 0, %s30
      %s50 = sphi 0, %s50
      %s52 = sphi 0, %s50
      %s53 = sphi 0, %s52
      %s67 = sphi 0, %s53
      %s71 = sphi 0, %s71
      %s73 = sphi 0, %s71
      %s74 = sphi 0, %s73
      %s88 = sphi 0, %s74
      %s94 = sphi 0, %s96
      %s97 = sphi 0, %s94
      %s98 = sphi 0, %s97
      %s114 = sphi 0, %s98
    $region4: #{tpu_custom_call.1} parent=1 // loop_header_branch
      %19 = sbr.rel (%p17) target = $region8
    $region5: #{tpu_custom_call.1} parent=1 // loop_body
      %s21 = ssub.s32 %s16, 1
      %s22 = ssub.s32 %s16, 2
      %s23 = sadd.s32 %s16, 1
      %s24 = ssub.s32 %s16, %s23
      %p25 = scmp.eq.s32.totalorder %s24, 0
      %s27 = sadd.s32 %s26, 1
      %s28 = scalar_select %p25, %s26, %s27
      %p31 = pneg %p25
      %p32 = scmp.eq.s32.totalorder %s16, 1
      %p33 = por %p31, %p32
      %p34 = scmp.ne.s32.totalorder %s26, %s29
      %p35 = scmp.eq.s32.totalorder %s16, 0
      %p36 = por %p34, %p35
      %p37 = scmp.ne.s32.totalorder %s26, %s29
      %p38 = scmp.eq.s32.totalorder %s21, 1
      %p39 = por %p37, %p38
      %p40 = scmp.ne.s32.totalorder %s29, %s30
      %p41 = scmp.eq.s32.totalorder %s21, 0
      %p42 = por %p40, %p41
      %p43 = scmp.ne.s32.totalorder %s29, %s30
      %p44 = scmp.eq.s32.totalorder %s22, 1
      %p45 = por %p43, %p44
      %p47 = scmp.ne.s32.totalorder %s30, %s46
      %p48 = scmp.eq.s32.totalorder %s22, 0
      %p49 = por %p47, %p48
      %s51 = sadd.s32 %s50, 1
      %p54 = scmp.eq.s32.totalorder %s16, 1
      %p55 = scmp.ne.s32.totalorder %s50, %s52
      %p56 = scmp.eq.s32.totalorder %s16, 0
      %p57 = por %p55, %p56
      %p58 = scmp.ne.s32.totalorder %s50, %s52
      %p59 = scmp.eq.s32.totalorder %s21, 1
      %p60 = por %p58, %p59
      %p61 = scmp.ne.s32.totalorder %s52, %s53
      %p62 = scmp.eq.s32.totalorder %s21, 0
      %p63 = por %p61, %p62
      %p64 = scmp.ne.s32.totalorder %s52, %s53
      %p65 = scmp.eq.s32.totalorder %s22, 1
      %p66 = por %p64, %p65
      %p68 = scmp.ne.s32.totalorder %s53, %s67
      %p69 = scmp.eq.s32.totalorder %s22, 0
      %p70 = por %p68, %p69
      %s72 = sadd.s32 %s71, 1
      %p75 = scmp.eq.s32.totalorder %s16, 1
      %p76 = scmp.ne.s32.totalorder %s71, %s73
      %p77 = scmp.eq.s32.totalorder %s16, 0
      %p78 = por %p76, %p77
      %p79 = scmp.ne.s32.totalorder %s71, %s73
      %p80 = scmp.eq.s32.totalorder %s21, 1
      %p81 = por %p79, %p80
      %p82 = scmp.ne.s32.totalorder %s73, %s74
      %p83 = scmp.eq.s32.totalorder %s21, 0
      %p84 = por %p82, %p83
      %p85 = scmp.ne.s32.totalorder %s73, %s74
      %p86 = scmp.eq.s32.totalorder %s22, 1
      %p87 = por %p85, %p86
      %p89 = scmp.ne.s32.totalorder %s74, %s88
      %p90 = scmp.eq.s32.totalorder %s22, 0
      %p91 = por %p89, %p90
      %s92 = ssub.s32 %s16, %s23
      %p93 = scmp.eq.s32.totalorder %s92, 0
      %s95 = sadd.s32 %s94, 1
      %s96 = scalar_select %p93, %s94, %s95
      %p99 = pneg %p93
      %p100 = scmp.eq.s32.totalorder %s16, 1
      %p101 = por %p99, %p100
      %p102 = scmp.ne.s32.totalorder %s94, %s97
      %p103 = scmp.eq.s32.totalorder %s16, 0
      %p104 = por %p102, %p103
      %p105 = scmp.ne.s32.totalorder %s94, %s97
      %p106 = scmp.eq.s32.totalorder %s21, 1
      %p107 = por %p105, %p106
      %p108 = scmp.ne.s32.totalorder %s97, %s98
      %p109 = scmp.eq.s32.totalorder %s21, 0
      %p110 = por %p108, %p109
      %p111 = scmp.ne.s32.totalorder %s97, %s98
      %p112 = scmp.eq.s32.totalorder %s22, 1
      %p113 = por %p111, %p112
      %p115 = scmp.ne.s32.totalorder %s98, %s114
      %p116 = scmp.eq.s32.totalorder %s22, 0
      %p117 = por %p115, %p116
      %p118 = scmp.le.s32.totalorder 1, %s16
      %p119 = scmp.lt.s32.totalorder %s16, 3
      %p120 = pnand %p118, %p119
      %p121 = pneg %p120
      // Predicated region
      $region9: #{tpu_custom_call.1} parent=5 // pred_check
        _
      $region10: #{tpu_custom_call.1} parent=5 // pred_check_branch
        %123 = sbr.rel (%p120) target = $region12
      $region11: #{tpu_custom_call.1} parent=5 // pred_region
        %s124 = ssub.s32 %s16, 1
        // Predicated region
        $region13: #{tpu_custom_call.1} parent=11 // pred_check
          %p125 = pneg %p63
        $region14: #{tpu_custom_call.1} parent=11 // pred_check_branch
          %127 = sbr.rel (%p125) target = $region16
        $region15: #{tpu_custom_call.1} parent=11 // pred_region
          %129 = vsyncadd [#allocation6], 0
          %s131 = sshll.u32 %s1, 4
          %s132 = int_to_ptr.hbm [resolvable:$true] %s131
          %s133 = sshll.u32 [#allocation5], 4
          %s134 = int_to_ptr.vmem [resolvable:$true] %s133
          %136 = dma.hbm_to_vmem [thread:$0]  %s132, 16, %s134, [#allocation6]
        $region16: #{tpu_custom_call.1} parent=11 // pred_fallthru
          _
        // Predicated region
        $region17: #{tpu_custom_call.1} parent=11 // pred_check
          %p137 = pneg %p84
        $region18: #{tpu_custom_call.1} parent=11 // pred_check_branch
          %139 = sbr.rel (%p137) target = $region20
        $region19: #{tpu_custom_call.1} parent=11 // pred_region
          _
        $region20: #{tpu_custom_call.1} parent=11 // pred_fallthru
          _
      $region12: #{tpu_custom_call.1} parent=5 // pred_fallthru
        _
      %p140 = scmp.lt.s32.totalorder %s16, 2
      // Predicated region
      $region21: #{tpu_custom_call.1} parent=5 // pred_check
        %p141 = pneg %p140
      $region22: #{tpu_custom_call.1} parent=5 // pred_check_branch
        %143 = sbr.rel (%p141) target = $region24
      $region23: #{tpu_custom_call.1} parent=5 // pred_region
        // Predicated region
        $region25: #{tpu_custom_call.1} parent=23 // pred_check
          %p144 = pneg %p36
        $region26: #{tpu_custom_call.1} parent=23 // pred_check_branch
          %146 = sbr.rel (%p144) target = $region28
        $region27: #{tpu_custom_call.1} parent=23 // pred_region
          %s147 = sand.u32 %s26, 1
          %s148 = scalar_lea.sflag [#allocation3], %s147
          %s149 = sand.u32 %s26, 1
          %s150 = smul.addr %s149, 32
          %s151 = scalar_lea.vmem [#allocation2], %s150
          %s152 = smul.u32 4, %s16
          %154 = vsyncadd %s148, 0
          %s155 = smul.addr %s152, 8
          %s156 = scalar_lea.hbm %s0, %s155
          %s157 = sshll.u32 %s156, 4
          %s158 = int_to_ptr.hbm [resolvable:$true] %s157
          %s159 = sshll.u32 %s151, 4
          %s160 = int_to_ptr.vmem [resolvable:$true] %s159
          %165 = dma.hbm_to_vmem [thread:$0]  %s158, 512, %s160, %s148, 128, 128, 8
        $region28: #{tpu_custom_call.1} parent=23 // pred_fallthru
          _
      $region24: #{tpu_custom_call.1} parent=5 // pred_fallthru
        _
      %p166 = scmp.le.s32.totalorder 1, %s16
      %p167 = scmp.lt.s32.totalorder %s16, 3
      %p168 = pnand %p166, %p167
      %p169 = pneg %p168
      // Predicated region
      $region29: #{tpu_custom_call.1} parent=5 // pred_check
        _
      $region30: #{tpu_custom_call.1} parent=5 // pred_check_branch
        %171 = sbr.rel (%p168) target = $region32
      $region31: #{tpu_custom_call.1} parent=5 // pred_region
        %s172 = ssub.s32 %s16, 1
        %s173 = sand.u32 %s29, 1
        %s174 = scalar_lea.sflag [#allocation3], %s173
        %s175 = sand.u32 %s29, 1
        %s176 = smul.addr %s175, 32
        %s177 = scalar_lea.vmem [#allocation2], %s176
        // Predicated region
        $region33: #{tpu_custom_call.1} parent=31 // pred_check
          %p178 = pneg %p42
        $region34: #{tpu_custom_call.1} parent=31 // pred_check_branch
          %180 = sbr.rel (%p178) target = $region36
        $region35: #{tpu_custom_call.1} parent=31 // pred_region
          %182 = dma.done %s174, 512
        $region36: #{tpu_custom_call.1} parent=31 // pred_fallthru
          _
        // Predicated region
        $region37: #{tpu_custom_call.1} parent=31 // pred_check
          %p183 = pneg %p63
        $region38: #{tpu_custom_call.1} parent=31 // pred_check_branch
          %185 = sbr.rel (%p183) target = $region40
        $region39: #{tpu_custom_call.1} parent=31 // pred_region
          %187 = dma.done [#allocation6], 16
        $region40: #{tpu_custom_call.1} parent=31 // pred_fallthru
          _
        %s188 = sand.u32 %s29, 1
        %s189 = scalar_lea.sflag [#allocation3], %s188
        %s190 = sand.u32 %s29, 1
        %s191 = smul.addr %s190, 32
        %s192 = scalar_lea.vmem [#allocation2], %s191
        %p193 = pneg %p42
        %p194 = pneg %p39
        %p195 = pneg %p63
        %p196 = pneg %p60
        %p197 = pneg %p84
        %p198 = pneg %p81
        %p199 = pneg %p110
        %p200 = pneg %p107
        %s201 = sand.u32 %s97, 1
        %s202 = scalar_lea.sflag [#allocation4], %s201
        %s203 = sand.u32 %s97, 1
        %s204 = smul.addr %s203, 32
        %s205 = scalar_lea.vmem [#allocation7], %s204
        %s206 = smul.u32 4, %s21
        %s207 = smul.u32 4, %s21
        %v208 = vld [vmem:[%s177] sm:$0xff]
        %v209 = vld [vmem:[%s177 + $0x8] sm:$0xff]
        %v210 = vld [vmem:[%s177 + $0x10] sm:$0xff]
        %v211 = vld [vmem:[%s177 + $0x18] sm:$0xff]
        %v212 = vld [vmem:[#allocation5] sm:$0x1]
        %v214 = vperm.slane %v212, 0
        %v216 = vsub.f32 %v208, %v214
        %v217 = vsub.f32 %v209, %v214
        %v218 = vsub.f32 %v210, %v214
        %v219 = vsub.f32 %v211, %v214
        %v220 = vld [vmem:[%s2] sm:$0x1]
        %v222 = vperm.slane %v220, 0
        %v224 = vmul.f32 %v216, %v222
        %v225 = vmul.f32 %v217, %v222
        %v226 = vmul.f32 %v218, %v222
        %v227 = vmul.f32 %v219, %v222
        %v228 = vsub.f32 %v224, 1.0
        %v229 = vsub.f32 %v225, 1.0
        %v230 = vsub.f32 %v226, 1.0
        %v231 = vsub.f32 %v227, 1.0
        %232 = vst [vmem:[%s205] sm:$0xff] %v228
        %233 = vst [vmem:[%s205 + $0x8] sm:$0xff] %v229
        %234 = vst [vmem:[%s205 + $0x10] sm:$0xff] %v230
        %235 = vst [vmem:[%s205 + $0x18] sm:$0xff] %v231
        %s236 = sand.u32 %s97, 1
        %s237 = scalar_lea.sflag [#allocation4], %s236
        %s238 = sand.u32 %s97, 1
        %s239 = smul.addr %s238, 32
        %s240 = scalar_lea.vmem [#allocation7], %s239
        // Predicated region
        $region41: #{tpu_custom_call.1} parent=31 // pred_check
          %p241 = pneg %p107
        $region42: #{tpu_custom_call.1} parent=31 // pred_check_branch
          %243 = sbr.rel (%p241) target = $region44
        $region43: #{tpu_custom_call.1} parent=31 // pred_region
          %s244 = smul.u32 4, %s21
          %246 = vsyncadd %s237, 0
          %s247 = smul.addr %s244, 8
          %s248 = scalar_lea.hbm %s3, %s247
          %s249 = sshll.u32 %s240, 4
          %s250 = int_to_ptr.vmem [resolvable:$true] %s249
          %s251 = sshll.u32 %s248, 4
          %s252 = int_to_ptr.hbm [resolvable:$true] %s251
          %257 = dma.vmem_to_hbm [thread:$0]  %s250, 512, %s252, %s237, 128, 128, 8
        $region44: #{tpu_custom_call.1} parent=31 // pred_fallthru
          _
      $region32: #{tpu_custom_call.1} parent=5 // pred_fallthru
        _
      %p258 = scmp.le.s32.totalorder 2, %s16
      // Predicated region
      $region45: #{tpu_custom_call.1} parent=5 // pred_check
        %p259 = pneg %p258
      $region46: #{tpu_custom_call.1} parent=5 // pred_check_branch
        %261 = sbr.rel (%p259) target = $region48
      $region47: #{tpu_custom_call.1} parent=5 // pred_region
        %s262 = ssub.s32 %s16, 2
        // Predicated region
        $region49: #{tpu_custom_call.1} parent=47 // pred_check
          %p263 = pneg %p113
        $region50: #{tpu_custom_call.1} parent=47 // pred_check_branch
          %265 = sbr.rel (%p263) target = $region52
        $region51: #{tpu_custom_call.1} parent=47 // pred_region
          %s266 = sand.u32 %s98, 1
          %s267 = scalar_lea.sflag [#allocation4], %s266
          %s268 = sand.u32 %s98, 1
          %s269 = smul.addr %s268, 32
          %s270 = scalar_lea.vmem [#allocation7], %s269
          %272 = dma.done %s267, 512
        $region52: #{tpu_custom_call.1} parent=47 // pred_fallthru
          _
      $region48: #{tpu_custom_call.1} parent=5 // pred_fallthru
        _
    $region6: #{tpu_custom_call.1} parent=1 // loop_footer
      %s20 = sadd.s32 1, %s16
    $region7: #{tpu_custom_call.1} parent=1 // loop_footer_branch
      %15 = sbr.rel target = $region3
    $region8: #{tpu_custom_call.1} parent=1 // loop_exit
      _
    %273 = vsyncpa [#allocation3], 1
    %s274 = scalar_lea.sflag [#allocation3], 1
    %275 = vsyncpa %s274, 1
    %276 = vsyncpa [#allocation6], 1
    %277 = vsyncpa [#allocation4], 1
    %s278 = scalar_lea.sflag [#allocation4], 1
    %279 = vsyncpa %s278, 1

</llo_original>
